<compile_context>
chip_gen: v5e
topology: v5e:2x2
jax: 0.10.0
libtpu: 0.0.40
codegen_flags: <defaults>
</compile_context>

<pallas_src>
import functools

import jax
import jax.numpy as jnp
from jax import lax
from jax.experimental import pallas as pl
from jax.experimental.pallas import tpu as pltpu

EPS = 1e-5
LANE = 128


def _round_up(x, m):
    return (x + m - 1) // m * m


def _pad_last(a, new):
    pad = new - a.shape[-1]
    if pad == 0:
        return a
    cfg = [(0, 0)] * (a.ndim - 1) + [(0, pad)]
    return jnp.pad(a, cfg)


def fold_bn(gamma, beta, mean, var, eps=EPS):
    scale = gamma / jnp.sqrt(var + eps)
    bias = beta - mean * scale
    return scale, bias


# ---------------------------------------------------------------------------
# Pointwise (1x1x1) conv as a row-tiled matmul, fused with BN (+ residual) + ReLU.
# bf16 MXU operands, f32 accumulation and epilogue.
# ---------------------------------------------------------------------------
def _pw_conv_bn_relu_kernel(x_ref, w_ref, scale_ref, bias_ref, o_ref):
    y = jnp.dot(x_ref[...], w_ref[...], preferred_element_type=jnp.float32)
    y = y * scale_ref[...] + bias_ref[...]
    o_ref[...] = jnp.maximum(y, 0.0).astype(o_ref.dtype)


def _pw_conv_bn_add_relu_kernel(x_ref, w_ref, scale_ref, bias_ref, res_ref, o_ref):
    y = jnp.dot(x_ref[...], w_ref[...], preferred_element_type=jnp.float32)
    y = y * scale_ref[...] + bias_ref[...] + res_ref[...].astype(jnp.float32)
    o_ref[...] = jnp.maximum(y, 0.0).astype(o_ref.dtype)


def pointwise_conv_bn_relu(x2d, w, scale, bias, residual=None, out_dtype=None, tm=512):
    M, cin = x2d.shape
    cout = w.shape[1]
    out_dtype = out_dtype or x2d.dtype
    tm = min(tm, M)  # small inputs: one full-extent block

    in_specs = [
        pl.BlockSpec((tm, cin), lambda i: (i, 0)),
        pl.BlockSpec((cin, cout), lambda i: (0, 0)),
        pl.BlockSpec((1, cout), lambda i: (0, 0)),
        pl.BlockSpec((1, cout), lambda i: (0, 0)),
    ]
    args = [x2d, w, scale.reshape(1, cout), bias.reshape(1, cout)]
    if residual is None:
        kernel = _pw_conv_bn_relu_kernel
    else:
        kernel = _pw_conv_bn_add_relu_kernel
        in_specs.append(pl.BlockSpec((tm, cout), lambda i: (i, 0)))
        args.append(residual)

    return pl.pallas_call(
        kernel,
        out_shape=jax.ShapeDtypeStruct((M, cout), out_dtype),
        grid=(pl.cdiv(M, tm),),
        in_specs=in_specs,
        out_specs=pl.BlockSpec((tm, cout), lambda i: (i, 0)),
        compiler_params=pltpu.CompilerParams(dimension_semantics=("parallel",)),
    )(*args)


# ---------------------------------------------------------------------------
# 3x3x3 conv (stride=1, padding=dilation) fused with BN + ReLU.
#
# Grid = (N, D_out, kd).  Per step: one padded depth plane (flattened to (Hp*Wp, C),
# channels on lanes).  Output rows are indexed on the *padded-width* raster
# r = h*Wp + w, so the input for tap (kh, kw) is simply rows [off, off + Nr) of the
# plane with the STATIC offset off = kh*dil*Wp + kw*dil  (no strided windows, no
# relayout per tap).  Columns w >= Wo of the raster are garbage and are cropped when
# the finalize phase stores row-by-row into the lane-dense output block.
# ---------------------------------------------------------------------------
def _conv3x3x3_bn_relu_kernel(x_ref, w_ref, scale_ref, bias_ref, o_ref, acc_ref, *,
                              dilation, Wp, Ho, Wo, Nr):
    kd = pl.program_id(2)

    @pl.when(kd == 0)
    def _():
        acc_ref[...] = jnp.zeros_like(acc_ref)

    # 9 taps for this kd: static row-offset slices of the flattened plane -> MXU.
    for kh in range(3):
        for kw in range(3):
            off = kh * dilation * Wp + kw * dilation
            window = x_ref[0, 0, off:off + Nr, :]            # (Nr, Cin) bf16
            wt = w_ref[kd * 9 + kh * 3 + kw]                 # (Cin, Cout) bf16
            acc_ref[...] += jnp.dot(window, wt, preferred_element_type=jnp.float32)

    @pl.when(kd == pl.num_programs(2) - 1)
    def _():
        y = jnp.maximum(acc_ref[...] * scale_ref[...] + bias_ref[...], 0.0)
        # Crop the padded-width columns; per-row static slices keep stores lane-dense.
        for h in range(Ho):
            o_ref[0, 0, h, :, :] = y[h * Wp:h * Wp + Wo, :].astype(o_ref.dtype)


def conv3x3x3_bn_relu(x, w_taps, scale, bias, dilation=1):
    """x: (N, D, H, W, C) bf16 (C padded to lane multiple); w_taps: (27, C, Cout) bf16."""
    N, D, H, W, C = x.shape
    cout = w_taps.shape[-1]
    p = dilation
    xp = jnp.pad(x, ((0, 0), (p, p), (p, p), (p, p), (0, 0)))
    Dp, Hp, Wp = D + 2 * p, H + 2 * p, W + 2 * p
    xpf = xp.reshape(N, Dp, Hp * Wp, C)              # flattened padded planes
    Do, Ho, Wo = D, H, W                             # stride=1, padding=dilation -> same size
    Nr = (Ho - 1) * Wp + Wo                          # valid raster rows (max tap slice fits)

    kernel = functools.partial(_conv3x3x3_bn_relu_kernel, dilation=dilation,
                               Wp=Wp, Ho=Ho, Wo=Wo, Nr=Nr)
    return pl.pallas_call(
        kernel,
        out_shape=jax.ShapeDtypeStruct((N, Do, Ho, Wo, cout), x.dtype),
        grid=(N, Do, 3),
        in_specs=[
            pl.BlockSpec((1, 1, Hp * Wp, C),
                         lambda n, d, kd: (n, d + kd * dilation, 0, 0)),
            pl.BlockSpec((27, C, cout), lambda n, d, kd: (0, 0, 0)),
            pl.BlockSpec((1, cout), lambda n, d, kd: (0, 0)),
            pl.BlockSpec((1, cout), lambda n, d, kd: (0, 0)),
        ],
        out_specs=pl.BlockSpec((1, 1, Ho, Wo, cout), lambda n, d, kd: (n, d, 0, 0, 0)),
        scratch_shapes=[pltpu.VMEM((Nr, cout), jnp.float32)],
        compiler_params=pltpu.CompilerParams(
            dimension_semantics=("parallel", "parallel", "arbitrary")),
    )(xpf, w_taps, scale.reshape(1, cout), bias.reshape(1, cout))


# ---------------------------------------------------------------------------
# Bottleneck forward (downsample=None -> identity residual: stride==1, inplanes==planes*4)
# ---------------------------------------------------------------------------
def bottleneck_forward(x_ncdhw, params, stride=1, dilation=1):
    if stride != 1:
        raise NotImplementedError("downsample=None (identity residual) requires stride == 1")

    x = jnp.transpose(x_ncdhw, (0, 2, 3, 4, 1))      # NCDHW -> NDHWC
    N, D, H, W, cin = x.shape
    planes = params["w1"].shape[1]
    cout3 = params["w3"].shape[1]
    assert cout3 == planes * 4 and cin == cout3, "identity residual needs inplanes == planes*4"

    cin_p = _round_up(cin, LANE)
    planes_p = _round_up(planes, LANE)
    cout3_p = _round_up(cout3, LANE)                 # == cin_p

    # Fold BN running stats (inference) and zero-pad channels to lane multiples.
    s1, b1 = fold_bn(*params["bn1"]); s1 = _pad_last(s1, planes_p); b1 = _pad_last(b1, planes_p)
    s2, b2 = fold_bn(*params["bn2"]); s2 = _pad_last(s2, planes_p); b2 = _pad_last(b2, planes_p)
    s3, b3 = fold_bn(*params["bn3"]); s3 = _pad_last(s3, cout3_p); b3 = _pad_last(b3, cout3_p)

    w1 = jnp.pad(params["w1"], ((0, cin_p - cin), (0, planes_p - planes))).astype(jnp.bfloat16)
    w2 = jnp.pad(params["w2"], ((0, 0), (0, 0), (0, 0),
                                (0, planes_p - planes), (0, planes_p - planes)))
    w2 = w2.reshape(27, planes_p, planes_p).astype(jnp.bfloat16)
    w3 = jnp.pad(params["w3"], ((0, planes_p - planes), (0, cout3_p - cout3))).astype(jnp.bfloat16)

    M = N * D * H * W
    x2d = _pad_last(x.reshape(M, cin), cin_p)        # f32 residual (padded channels are 0)
    x2d_bf = x2d.astype(jnp.bfloat16)

    out1 = pointwise_conv_bn_relu(x2d_bf, w1, s1, b1, out_dtype=jnp.bfloat16)
    out1 = out1.reshape(N, D, H, W, planes_p)
    out2 = conv3x3x3_bn_relu(out1, w2, s2, b2, dilation=dilation)        # bf16, same spatial size
    out2_2d = out2.reshape(M, planes_p)
    out3 = pointwise_conv_bn_relu(out2_2d, w3, s3, b3, residual=x2d, out_dtype=jnp.float32)

    out = out3[:, :cout3].reshape(N, D, H, W, cout3)
    return jnp.transpose(out, (0, 4, 1, 2, 3))       # NDHWC -> NCDHW


# ---------------------------------------------------------------------------
# Pure-JAX f32 reference for verification
# ---------------------------------------------------------------------------
def bottleneck_reference(x_ncdhw, params, stride=1, dilation=1):
    x = jnp.transpose(x_ncdhw, (0, 2, 3, 4, 1))
    s1, b1 = fold_bn(*params["bn1"])
    s2, b2 = fold_bn(*params["bn2"])
    s3, b3 = fold_bn(*params["bn3"])
    o = jnp.einsum("ndhwi,io->ndhwo", x, params["w1"])
    o = jnp.maximum(o * s1 + b1, 0.0)
    o = lax.conv_general_dilated(
        o, params["w2"], window_strides=(stride,) * 3,
        padding=[(dilation, dilation)] * 3, rhs_dilation=(dilation,) * 3,
        dimension_numbers=("NDHWC", "DHWIO", "NDHWC"))
    o = jnp.maximum(o * s2 + b2, 0.0)
    o = jnp.einsum("ndhwi,io->ndhwo", o, params["w3"])
    o = jnp.maximum(o * s3 + b3 + x, 0.0)
    return jnp.transpose(o, (0, 4, 1, 2, 3))


def make_params(key, inplanes, planes):
    expansion = 4
    ks = jax.random.split(key, 6)

    def bn_params(k, c):
        k1, k2, k3, k4 = jax.random.split(k, 4)
        gamma = jax.random.uniform(k1, (c,), jnp.float32, 0.5, 1.5)
        beta = 0.1 * jax.random.normal(k2, (c,), jnp.float32)
        mean = 0.1 * jax.random.normal(k3, (c,), jnp.float32)
        var = jax.random.uniform(k4, (c,), jnp.float32, 0.5, 1.5)
        return (gamma, beta, mean, var)

    return {
        "w1": 0.1 * jax.random.normal(ks[0], (inplanes, planes), jnp.float32),
        "w2": 0.1 * jax.random.normal(ks[1], (3, 3, 3, planes, planes), jnp.float32),
        "w3": 0.1 * jax.random.normal(ks[2], (planes, planes * expansion), jnp.float32),
        "bn1": bn_params(ks[3], planes),
        "bn2": bn_params(ks[4], planes),
        "bn3": bn_params(ks[5], planes * expansion),
    }


if __name__ == "__main__":
    # Small shapes: inplanes = planes * expansion so the identity residual is valid.
    N, inplanes, planes = 2, 32, 8
    D = H = W = 8

    key = jax.random.PRNGKey(0)
    kx, kp = jax.random.split(key)
    x = jax.random.normal(kx, (N, inplanes, D, H, W), jnp.float32)  # NCDHW like PyTorch
    params = make_params(kp, inplanes, planes)

    for dilation in (1, 2):
        out = bottleneck_forward(x, params, stride=1, dilation=dilation)
        out = jax.block_until_ready(out)
        ref = bottleneck_reference(x, params, stride=1, dilation=dilation)
        ref = jax.block_until_ready(ref)
        assert out.shape == (N, planes * 4, D, H, W)
        err = float(jnp.max(jnp.abs(out - ref)))
        # bf16 MXU operands + bf16 intermediates -> relaxed tolerance vs f32 reference.
        assert jnp.allclose(out, ref, atol=1e-1, rtol=1e-1), (dilation, err)

    print("KERNEL_OK")
</pallas_src>

<mosaic_0001>
module attributes {stable_mosaic.version = 11 : i64} {
  func.func @_pw_conv_bn_relu_kernel(%arg0: i32, %arg1: memref<512x128xbf16, #tpu.memory_space<vmem>>, %arg2: memref<128x128xbf16, #tpu.memory_space<vmem>>, %arg3: memref<1x128xf32, #tpu.memory_space<vmem>>, %arg4: memref<1x128xf32, #tpu.memory_space<vmem>>, %arg5: memref<512x128xbf16, #tpu.memory_space<vmem>>) attributes {dimension_semantics = [#tpu.dimension_semantics<parallel>], iteration_bounds = array<i64: 2>, scalar_prefetch = 0 : i64, scratch_operands = 0 : i64, tpu.core_type = #tpu.core_type<tc>, window_params = [{transform_indices = @transform_0, window_bounds = array<i64: 512, 128>}, {pipeline_mode = #tpu.pipeline_mode<synchronous>, transform_indices = @transform_1, window_bounds = array<i64: 128, 128>}, {pipeline_mode = #tpu.pipeline_mode<synchronous>, transform_indices = @transform_2, window_bounds = array<i64: 1, 128>}, {pipeline_mode = #tpu.pipeline_mode<synchronous>, transform_indices = @transform_3, window_bounds = array<i64: 1, 128>}, {transform_indices = @transform_4, window_bounds = array<i64: 512, 128>}]} {
    %c0 = arith.constant 0 : index
    %c0_0 = arith.constant 0 : index
    %0 = vector.load %arg1[%c0, %c0_0] : memref<512x128xbf16, #tpu.memory_space<vmem>>, vector<512x128xbf16>
    %c0_1 = arith.constant 0 : index
    %c0_2 = arith.constant 0 : index
    %1 = vector.load %arg2[%c0_1, %c0_2] : memref<128x128xbf16, #tpu.memory_space<vmem>>, vector<128x128xbf16>
    %cst = arith.constant dense<0.000000e+00> : vector<512x128xf32>
    %2 = tpu.matmul %0, %1, %cst {dimension_numbers = #tpu.dot_dimension_numbers<[1], [0], [0], [1], [0, 0, 1, 1], [], []>} : vector<512x128xbf16>, vector<128x128xbf16>, vector<512x128xf32> -> vector<512x128xf32>
    %c0_3 = arith.constant 0 : index
    %c0_4 = arith.constant 0 : index
    %3 = vector.load %arg3[%c0_3, %c0_4] : memref<1x128xf32, #tpu.memory_space<vmem>>, vector<1x128xf32>
    %4 = vector.broadcast %3 : vector<1x128xf32> to vector<512x128xf32>
    %5 = arith.mulf %2, %4 : vector<512x128xf32>
    %c0_5 = arith.constant 0 : index
    %c0_6 = arith.constant 0 : index
    %6 = vector.load %arg4[%c0_5, %c0_6] : memref<1x128xf32, #tpu.memory_space<vmem>>, vector<1x128xf32>
    %7 = vector.broadcast %6 : vector<1x128xf32> to vector<512x128xf32>
    %8 = arith.addf %5, %7 : vector<512x128xf32>
    %cst_7 = arith.constant 0.000000e+00 : f32
    %9 = vector.broadcast %cst_7 : f32 to vector<512x128xf32>
    %10 = arith.maximumf %8, %9 : vector<512x128xf32>
    %11 = arith.truncf %10 : vector<512x128xf32> to vector<512x128xbf16>
    %c0_8 = arith.constant 0 : index
    %c0_9 = arith.constant 0 : index
    %12 = vector.load %arg5[%c0_8, %c0_9] : memref<512x128xbf16, #tpu.memory_space<vmem>>, vector<512x128xbf16>
    tpu.vector_store %arg5[%c0_8, %c0_9], %11 {strides = array<i32>} : memref<512x128xbf16, #tpu.memory_space<vmem>>, vector<512x128xbf16>,
    return
  }
  func.func @transform_0(%arg0: i32) -> (i32, i32) {
    %c0_i32 = arith.constant 0 : i32
    %c0_i32_0 = arith.constant 0 : i32
    return %arg0, %c0_i32 : i32, i32
  }
  func.func @transform_1(%arg0: i32) -> (i32, i32) {
    %c0_i32 = arith.constant 0 : i32
    %c0_i32_0 = arith.constant 0 : i32
    %c0_i32_1 = arith.constant 0 : i32
    return %c0_i32, %c0_i32_0 : i32, i32
  }
  func.func @transform_2(%arg0: i32) -> (i32, i32) {
    %c0_i32 = arith.constant 0 : i32
    %c0_i32_0 = arith.constant 0 : i32
    %c0_i32_1 = arith.constant 0 : i32
    return %c0_i32, %c0_i32_0 : i32, i32
  }
  func.func @transform_3(%arg0: i32) -> (i32, i32) {
    %c0_i32 = arith.constant 0 : i32
    %c0_i32_0 = arith.constant 0 : i32
    %c0_i32_1 = arith.constant 0 : i32
    return %c0_i32, %c0_i32_0 : i32, i32
  }
  func.func @transform_4(%arg0: i32) -> (i32, i32) {
    %c0_i32 = arith.constant 0 : i32
    %c0_i32_0 = arith.constant 0 : i32
    return %arg0, %c0_i32 : i32, i32
  }
}

</mosaic_0001>

<llo_original>
// kernel: tpu_custom_call.1
$region0: #{tpu_custom_call.1}
  #allocation0 [shape = 'u32[]', space=smem, size = 0x4, offset = 0x4, fixed_abs, tag = 'smem constant byte address 0x4 - core index']
  #allocation1 [shape = 'u32[72,128]{1,0:T(1,128)}', space=vmem, size = 0x9000, scoped, tag = 'internal scratch']
  %s0 = inlined_call_operand.hbm [shape: bf16[1024,128], index: 0, kind: input, shape index: {}]
  %s1 = inlined_call_operand.hbm [shape: bf16[128,128], index: 1, kind: input, shape index: {}]
  %s2 = inlined_call_operand.vmem [shape: f32[1,128], index: 2, kind: input, shape index: {}]
  %s3 = inlined_call_operand.vmem [shape: f32[1,128], index: 3, kind: input, shape index: {}]
  %s4 = inlined_call_operand.hbm [shape: bf16[1024,128], index: 4, kind: output, shape index: {}]
  %s5 = sld [smem:[#allocation0]]
  $region57: #{tpu_custom_call.1} parent=0
    _
  %s7 = ssub.s32 1, %s5
  %s8 = scalar_select 0, %s7, %s5
  $region1: #{tpu_custom_call.1} parent=0
    #allocation2 [shape = 'u8[262144]{0}', space=vmem, size = 0x40000, scoped, tag = 'input window, operand 0']
    #allocation3 [shape = 's32[2]{0}', space=sflag, size = 0x8, scoped, tag = 'scoped memory for tpu_custom_call.1']
    #allocation4 [shape = 's32[2]{0}', space=sflag, size = 0x8, scoped, tag = 'scoped memory for tpu_custom_call.1']
    #allocation5 [shape = 'u8[32768]{0}', space=vmem, size = 0x8000, scoped, tag = 'input window, operand 1, single buffered']
    #allocation6 [shape = 's32[1]{0}', space=sflag, size = 0x4, scoped, tag = 'scoped memory for tpu_custom_call.1']
    #allocation7 [shape = 'u8[262144]{0}', space=vmem, size = 0x40000, scoped, tag = 'output window, operand 0']
    %9 = vsyncpa [#allocation3], 0
    %s10 = scalar_lea.sflag [#allocation3], 1
    %11 = vsyncpa %s10, 0
    %12 = vsyncpa [#allocation6], 0
    %13 = vsyncpa [#allocation4], 0
    %s14 = scalar_lea.sflag [#allocation4], 1
    %15 = vsyncpa %s14, 0
    loop: start=0, step=1, limit=4
    $region2: #{tpu_custom_call.1} parent=1 // loop_pre_header
      _
    $region3: #{tpu_custom_call.1} parent=1 // loop_header
      %s17 = sphi 0, %s21
      %p18 = scmp.ge.s32.totalorder %s17, 4
      %s27 = sphi 0, %s29
      %s30 = sphi 0, %s27
      %s31 = sphi 0, %s30
      %s47 = sphi 0, %s31
      %s51 = sphi 0, %s51
      %s53 = sphi 0, %s51
      %s54 = sphi 0, %s53
      %s68 = sphi 0, %s54
      %s72 = sphi 0, %s72
      %s74 = sphi 0, %s72
      %s75 = sphi 0, %s74
      %s89 = sphi 0, %s75
      %s93 = sphi 0, %s93
      %s95 = sphi 0, %s93
      %s96 = sphi 0, %s95
      %s110 = sphi 0, %s96
      %s116 = sphi 0, %s118
      %s119 = sphi 0, %s116
      %s120 = sphi 0, %s119
      %s136 = sphi 0, %s120
    $region4: #{tpu_custom_call.1} parent=1 // loop_header_branch
      %20 = sbr.rel (%p18) target = $region8
    $region5: #{tpu_custom_call.1} parent=1 // loop_body
      %s22 = ssub.s32 %s17, 1
      %s23 = ssub.s32 %s17, 2
      %s24 = sadd.s32 %s17, 1
      %s25 = ssub.s32 %s17, %s24
      %p26 = scmp.eq.s32.totalorder %s25, 0
      %s28 = sadd.s32 %s27, 1
      %s29 = scalar_select %p26, %s27, %s28
      %p32 = pneg %p26
      %p33 = scmp.eq.s32.totalorder %s17, 1
      %p34 = por %p32, %p33
      %p35 = scmp.ne.s32.totalorder %s27, %s30
      %p36 = scmp.eq.s32.totalorder %s17, 0
      %p37 = por %p35, %p36
      %p38 = scmp.ne.s32.totalorder %s27, %s30
      %p39 = scmp.eq.s32.totalorder %s22, 1
      %p40 = por %p38, %p39
      %p41 = scmp.ne.s32.totalorder %s30, %s31
      %p42 = scmp.eq.s32.totalorder %s22, 0
      %p43 = por %p41, %p42
      %p44 = scmp.ne.s32.totalorder %s30, %s31
      %p45 = scmp.eq.s32.totalorder %s23, 1
      %p46 = por %p44, %p45
      %p48 = scmp.ne.s32.totalorder %s31, %s47
      %p49 = scmp.eq.s32.totalorder %s23, 0
      %p50 = por %p48, %p49
      %s52 = sadd.s32 %s51, 1
      %p55 = scmp.eq.s32.totalorder %s17, 1
      %p56 = scmp.ne.s32.totalorder %s51, %s53
      %p57 = scmp.eq.s32.totalorder %s17, 0
      %p58 = por %p56, %p57
      %p59 = scmp.ne.s32.totalorder %s51, %s53
      %p60 = scmp.eq.s32.totalorder %s22, 1
      %p61 = por %p59, %p60
      %p62 = scmp.ne.s32.totalorder %s53, %s54
      %p63 = scmp.eq.s32.totalorder %s22, 0
      %p64 = por %p62, %p63
      %p65 = scmp.ne.s32.totalorder %s53, %s54
      %p66 = scmp.eq.s32.totalorder %s23, 1
      %p67 = por %p65, %p66
      %p69 = scmp.ne.s32.totalorder %s54, %s68
      %p70 = scmp.eq.s32.totalorder %s23, 0
      %p71 = por %p69, %p70
      %s73 = sadd.s32 %s72, 1
      %p76 = scmp.eq.s32.totalorder %s17, 1
      %p77 = scmp.ne.s32.totalorder %s72, %s74
      %p78 = scmp.eq.s32.totalorder %s17, 0
      %p79 = por %p77, %p78
      %p80 = scmp.ne.s32.totalorder %s72, %s74
      %p81 = scmp.eq.s32.totalorder %s22, 1
      %p82 = por %p80, %p81
      %p83 = scmp.ne.s32.totalorder %s74, %s75
      %p84 = scmp.eq.s32.totalorder %s22, 0
      %p85 = por %p83, %p84
      %p86 = scmp.ne.s32.totalorder %s74, %s75
      %p87 = scmp.eq.s32.totalorder %s23, 1
      %p88 = por %p86, %p87
      %p90 = scmp.ne.s32.totalorder %s75, %s89
      %p91 = scmp.eq.s32.totalorder %s23, 0
      %p92 = por %p90, %p91
      %s94 = sadd.s32 %s93, 1
      %p97 = scmp.eq.s32.totalorder %s17, 1
      %p98 = scmp.ne.s32.totalorder %s93, %s95
      %p99 = scmp.eq.s32.totalorder %s17, 0
      %p100 = por %p98, %p99
      %p101 = scmp.ne.s32.totalorder %s93, %s95
      %p102 = scmp.eq.s32.totalorder %s22, 1
      %p103 = por %p101, %p102
      %p104 = scmp.ne.s32.totalorder %s95, %s96
      %p105 = scmp.eq.s32.totalorder %s22, 0
      %p106 = por %p104, %p105
      %p107 = scmp.ne.s32.totalorder %s95, %s96
      %p108 = scmp.eq.s32.totalorder %s23, 1
      %p109 = por %p107, %p108
      %p111 = scmp.ne.s32.totalorder %s96, %s110
      %p112 = scmp.eq.s32.totalorder %s23, 0
      %p113 = por %p111, %p112
      %s114 = ssub.s32 %s17, %s24
      %p115 = scmp.eq.s32.totalorder %s114, 0
      %s117 = sadd.s32 %s116, 1
      %s118 = scalar_select %p115, %s116, %s117
      %p121 = pneg %p115
      %p122 = scmp.eq.s32.totalorder %s17, 1
      %p123 = por %p121, %p122
      %p124 = scmp.ne.s32.totalorder %s116, %s119
      %p125 = scmp.eq.s32.totalorder %s17, 0
      %p126 = por %p124, %p125
      %p127 = scmp.ne.s32.totalorder %s116, %s119
      %p128 = scmp.eq.s32.totalorder %s22, 1
      %p129 = por %p127, %p128
      %p130 = scmp.ne.s32.totalorder %s119, %s120
      %p131 = scmp.eq.s32.totalorder %s22, 0
      %p132 = por %p130, %p131
      %p133 = scmp.ne.s32.totalorder %s119, %s120
      %p134 = scmp.eq.s32.totalorder %s23, 1
      %p135 = por %p133, %p134
      %p137 = scmp.ne.s32.totalorder %s120, %s136
      %p138 = scmp.eq.s32.totalorder %s23, 0
      %p139 = por %p137, %p138
      %p140 = scmp.le.s32.totalorder 1, %s17
      %p141 = scmp.lt.s32.totalorder %s17, 3
      %p142 = pnand %p140, %p141
      %p143 = pneg %p142
      // Predicated region
      $region9: #{tpu_custom_call.1} parent=5 // pred_check
        _
      $region10: #{tpu_custom_call.1} parent=5 // pred_check_branch
        %145 = sbr.rel (%p142) target = $region12
      $region11: #{tpu_custom_call.1} parent=5 // pred_region
        %s146 = ssub.s32 %s17, 1
        // Predicated region
        $region13: #{tpu_custom_call.1} parent=11 // pred_check
          %p147 = pneg %p64
        $region14: #{tpu_custom_call.1} parent=11 // pred_check_branch
          %149 = sbr.rel (%p147) target = $region16
        $region15: #{tpu_custom_call.1} parent=11 // pred_region
          %151 = vsyncadd [#allocation6], 0
          %s152 = sshll.u32 %s1, 4
          %s153 = int_to_ptr.hbm [resolvable:$true] %s152
          %s154 = sshll.u32 [#allocation5], 4
          %s155 = int_to_ptr.vmem [resolvable:$true] %s154
          %160 = dma.hbm_to_vmem [thread:$0]  %s153, 1024, %s155, [#allocation6], 64, 64, 4
        $region16: #{tpu_custom_call.1} parent=11 // pred_fallthru
          _
        // Predicated region
        $region17: #{tpu_custom_call.1} parent=11 // pred_check
          %p161 = pneg %p85
        $region18: #{tpu_custom_call.1} parent=11 // pred_check_branch
          %163 = sbr.rel (%p161) target = $region20
        $region19: #{tpu_custom_call.1} parent=11 // pred_region
          _
        $region20: #{tpu_custom_call.1} parent=11 // pred_fallthru
          _
        // Predicated region
        $region21: #{tpu_custom_call.1} parent=11 // pred_check
          %p164 = pneg %p106
        $region22: #{tpu_custom_call.1} parent=11 // pred_check_branch
          %166 = sbr.rel (%p164) target = $region24
        $region23: #{tpu_custom_call.1} parent=11 // pred_region
          _
        $region24: #{tpu_custom_call.1} parent=11 // pred_fallthru
          _
      $region12: #{tpu_custom_call.1} parent=5 // pred_fallthru
        _
      %p167 = scmp.lt.s32.totalorder %s17, 2
      // Predicated region
      $region25: #{tpu_custom_call.1} parent=5 // pred_check
        %p168 = pneg %p167
      $region26: #{tpu_custom_call.1} parent=5 // pred_check_branch
        %170 = sbr.rel (%p168) target = $region28
      $region27: #{tpu_custom_call.1} parent=5 // pred_region
        // Predicated region
        $region29: #{tpu_custom_call.1} parent=27 // pred_check
          %p171 = pneg %p37
        $region30: #{tpu_custom_call.1} parent=27 // pred_check_branch
          %173 = sbr.rel (%p171) target = $region32
        $region31: #{tpu_custom_call.1} parent=27 // pred_region
          %s174 = sand.u32 %s27, 1
          %s175 = scalar_lea.sflag [#allocation3], %s174
          %s176 = sand.u32 %s27, 1
          %s177 = smul.addr %s176, 256
          %s178 = scalar_lea.vmem [#allocation2], %s177
          %s179 = smul.u32 64, %s17
          %181 = vsyncadd %s175, 0
          %s182 = smul.addr %s179, 4
          %s183 = scalar_lea.hbm %s0, %s182
          %s184 = sshll.u32 %s183, 4
          %s185 = int_to_ptr.hbm [resolvable:$true] %s184
          %s186 = sshll.u32 %s178, 4
          %s187 = int_to_ptr.vmem [resolvable:$true] %s186
          %192 = dma.hbm_to_vmem [thread:$0]  %s185, 4096, %s187, %s175, 64, 64, 4
        $region32: #{tpu_custom_call.1} parent=27 // pred_fallthru
          _
      $region28: #{tpu_custom_call.1} parent=5 // pred_fallthru
        _
      %p193 = scmp.le.s32.totalorder 1, %s17
      %p194 = scmp.lt.s32.totalorder %s17, 3
      %p195 = pnand %p193, %p194
      %p196 = pneg %p195
      // Predicated region
      $region33: #{tpu_custom_call.1} parent=5 // pred_check
        _
      $region34: #{tpu_custom_call.1} parent=5 // pred_check_branch
        %198 = sbr.rel (%p195) target = $region36
      $region35: #{tpu_custom_call.1} parent=5 // pred_region
        %s199 = ssub.s32 %s17, 1
        %s200 = sand.u32 %s30, 1
        %s201 = scalar_lea.sflag [#allocation3], %s200
        %s202 = sand.u32 %s30, 1
        %s203 = smul.addr %s202, 256
        %s204 = scalar_lea.vmem [#allocation2], %s203
        // Predicated region
        $region37: #{tpu_custom_call.1} parent=35 // pred_check
          %p205 = pneg %p43
        $region38: #{tpu_custom_call.1} parent=35 // pred_check_branch
          %207 = sbr.rel (%p205) target = $region40
        $region39: #{tpu_custom_call.1} parent=35 // pred_region
          %209 = dma.done %s201, 4096
        $region40: #{tpu_custom_call.1} parent=35 // pred_fallthru
          _
        // Predicated region
        $region41: #{tpu_custom_call.1} parent=35 // pred_check
          %p210 = pneg %p64
        $region42: #{tpu_custom_call.1} parent=35 // pred_check_branch
          %212 = sbr.rel (%p210) target = $region44
        $region43: #{tpu_custom_call.1} parent=35 // pred_region
          %214 = dma.done [#allocation6], 1024
        $region44: #{tpu_custom_call.1} parent=35 // pred_fallthru
          _
        %s215 = sand.u32 %s30, 1
        %s216 = scalar_lea.sflag [#allocation3], %s215
        %s217 = sand.u32 %s30, 1
        %s218 = smul.addr %s217, 256
        %s219 = scalar_lea.vmem [#allocation2], %s218
        %p220 = pneg %p43
        %p221 = pneg %p40
        %p222 = pneg %p64
        %p223 = pneg %p61
        %p224 = pneg %p85
        %p225 = pneg %p82
        %p226 = pneg %p106
        %p227 = pneg %p103
        %p228 = pneg %p132
        %p229 = pneg %p129
        %s230 = sand.u32 %s119, 1
        %s231 = scalar_lea.sflag [#allocation4], %s230
        %s232 = sand.u32 %s119, 1
        %s233 = smul.addr %s232, 256
        %s234 = scalar_lea.vmem [#allocation7], %s233
        %s235 = smul.u32 64, %s22
        %s236 = smul.u32 64, %s22
        %v237 = vld [vmem:[%s204] sm:$0xf]
        %v238 = vld [vmem:[%s204 + $0x4] sm:$0xf]
        %v239 = vld [vmem:[%s204 + $0x8] sm:$0xf]
        %v240 = vld [vmem:[%s204 + $0xc] sm:$0xf]
        %v241 = vld [vmem:[%s204 + $0x10] sm:$0xf]
        %v242 = vld [vmem:[%s204 + $0x14] sm:$0xf]
        %v243 = vld [vmem:[%s204 + $0x18] sm:$0xf]
        %v244 = vld [vmem:[%s204 + $0x1c] sm:$0xf]
        %v245 = vld [vmem:[%s204 + $0x20] sm:$0xf]
        %v246 = vld [vmem:[%s204 + $0x24] sm:$0xf]
        %v247 = vld [vmem:[%s204 + $0x28] sm:$0xf]
        %v248 = vld [vmem:[%s204 + $0x2c] sm:$0xf]
        %v249 = vld [vmem:[%s204 + $0x30] sm:$0xf]
        %v250 = vld [vmem:[%s204 + $0x34] sm:$0xf]
        %v251 = vld [vmem:[%s204 + $0x38] sm:$0xf]
        %v252 = vld [vmem:[%s204 + $0x3c] sm:$0xf]
        %v253 = vld [vmem:[%s204 + $0x40] sm:$0xf]
        %v254 = vld [vmem:[%s204 + $0x44] sm:$0xf]
        %v255 = vld [vmem:[%s204 + $0x48] sm:$0xf]
        %v256 = vld [vmem:[%s204 + $0x4c] sm:$0xf]
        %v257 = vld [vmem:[%s204 + $0x50] sm:$0xf]
        %v258 = vld [vmem:[%s204 + $0x54] sm:$0xf]
        %v259 = vld [vmem:[%s204 + $0x58] sm:$0xf]
        %v260 = vld [vmem:[%s204 + $0x5c] sm:$0xf]
        %v261 = vld [vmem:[%s204 + $0x60] sm:$0xf]
        %v262 = vld [vmem:[%s204 + $0x64] sm:$0xf]
        %v263 = vld [vmem:[%s204 + $0x68] sm:$0xf]
        %v264 = vld [vmem:[%s204 + $0x6c] sm:$0xf]
        %v265 = vld [vmem:[%s204 + $0x70] sm:$0xf]
        %v266 = vld [vmem:[%s204 + $0x74] sm:$0xf]
        %v267 = vld [vmem:[%s204 + $0x78] sm:$0xf]
        %v268 = vld [vmem:[%s204 + $0x7c] sm:$0xf]
        %v269 = vld [vmem:[%s204 + $0x80] sm:$0xf]
        %v270 = vld [vmem:[%s204 + $0x84] sm:$0xf]
        %v271 = vld [vmem:[%s204 + $0x88] sm:$0xf]
        %v272 = vld [vmem:[%s204 + $0x8c] sm:$0xf]
        %v273 = vld [vmem:[%s204 + $0x90] sm:$0xf]
        %v274 = vld [vmem:[%s204 + $0x94] sm:$0xf]
        %v275 = vld [vmem:[%s204 + $0x98] sm:$0xf]
        %v276 = vld [vmem:[%s204 + $0x9c] sm:$0xf]
        %v277 = vld [vmem:[%s204 + $0xa0] sm:$0xf]
        %v278 = vld [vmem:[%s204 + $0xa4] sm:$0xf]
        %v279 = vld [vmem:[%s204 + $0xa8] sm:$0xf]
        %v280 = vld [vmem:[%s204 + $0xac] sm:$0xf]
        %v281 = vld [vmem:[%s204 + $0xb0] sm:$0xf]
        %v282 = vld [vmem:[%s204 + $0xb4] sm:$0xf]
        %v283 = vld [vmem:[%s204 + $0xb8] sm:$0xf]
        %v284 = vld [vmem:[%s204 + $0xbc] sm:$0xf]
        %v285 = vld [vmem:[%s204 + $0xc0] sm:$0xf]
        %v286 = vld [vmem:[%s204 + $0xc4] sm:$0xf]
        %v287 = vld [vmem:[%s204 + $0xc8] sm:$0xf]
        %v288 = vld [vmem:[%s204 + $0xcc] sm:$0xf]
        %v289 = vld [vmem:[%s204 + $0xd0] sm:$0xf]
        %v290 = vld [vmem:[%s204 + $0xd4] sm:$0xf]
        %v291 = vld [vmem:[%s204 + $0xd8] sm:$0xf]
        %v292 = vld [vmem:[%s204 + $0xdc] sm:$0xf]
        %v293 = vld [vmem:[%s204 + $0xe0] sm:$0xf]
        %v294 = vld [vmem:[%s204 + $0xe4] sm:$0xf]
        %v295 = vld [vmem:[%s204 + $0xe8] sm:$0xf]
        %v296 = vld [vmem:[%s204 + $0xec] sm:$0xf]
        %v297 = vld [vmem:[%s204 + $0xf0] sm:$0xf]
        %v298 = vld [vmem:[%s204 + $0xf4] sm:$0xf]
        %v299 = vld [vmem:[%s204 + $0xf8] sm:$0xf]
        %v300 = vld [vmem:[%s204 + $0xfc] sm:$0xf]
        %v301 = vld [vmem:[#allocation5] sm:$0xf]
        %v302 = vld [vmem:[#allocation5 + $0x4] sm:$0xf]
        %v303 = vld [vmem:[#allocation5 + $0x8] sm:$0xf]
        %v304 = vld [vmem:[#allocation5 + $0xc] sm:$0xf]
        %v305 = vld [vmem:[#allocation5 + $0x10] sm:$0xf]
        %v306 = vld [vmem:[#allocation5 + $0x14] sm:$0xf]
        %v307 = vld [vmem:[#allocation5 + $0x18] sm:$0xf]
        %v308 = vld [vmem:[#allocation5 + $0x1c] sm:$0xf]
        %v309 = vld [vmem:[#allocation5 + $0x20] sm:$0xf]
        %v310 = vld [vmem:[#allocation5 + $0x24] sm:$0xf]
        %v311 = vld [vmem:[#allocation5 + $0x28] sm:$0xf]
        %v312 = vld [vmem:[#allocation5 + $0x2c] sm:$0xf]
        %v313 = vld [vmem:[#allocation5 + $0x30] sm:$0xf]
        %v314 = vld [vmem:[#allocation5 + $0x34] sm:$0xf]
        %v315 = vld [vmem:[#allocation5 + $0x38] sm:$0xf]
        %v316 = vld [vmem:[#allocation5 + $0x3c] sm:$0xf]
        %v381 = vunpack.c.l.b16 %v237
        %v382 = vunpack.c.l.b16 %v238
        %v383 = vunpack.c.l.b16 %v239
        %v384 = vunpack.c.l.b16 %v240
        %v385 = vunpack.c.l.b16 %v241
        %v386 = vunpack.c.l.b16 %v242
        %v387 = vunpack.c.l.b16 %v243
        %v388 = vunpack.c.l.b16 %v244
        %v389 = vunpack.c.l.b16 %v245
        %v390 = vunpack.c.l.b16 %v246
        %v391 = vunpack.c.l.b16 %v247
        %v392 = vunpack.c.l.b16 %v248
        %v393 = vunpack.c.l.b16 %v249
        %v394 = vunpack.c.l.b16 %v250
        %v395 = vunpack.c.l.b16 %v251
        %v396 = vunpack.c.l.b16 %v252
        %v397 = vunpack.c.l.b16 %v253
        %v398 = vunpack.c.l.b16 %v254
        %v399 = vunpack.c.l.b16 %v255
        %v400 = vunpack.c.l.b16 %v256
        %v401 = vunpack.c.l.b16 %v257
        %v402 = vunpack.c.l.b16 %v258
        %v403 = vunpack.c.l.b16 %v259
        %v404 = vunpack.c.l.b16 %v260
        %v405 = vunpack.c.l.b16 %v261
        %v406 = vunpack.c.l.b16 %v262
        %v407 = vunpack.c.l.b16 %v263
        %v408 = vunpack.c.l.b16 %v264
        %v409 = vunpack.c.l.b16 %v265
        %v410 = vunpack.c.l.b16 %v266
        %v411 = vunpack.c.l.b16 %v267
        %v412 = vunpack.c.l.b16 %v268
        %v413 = vunpack.c.l.b16 %v269
        %v414 = vunpack.c.l.b16 %v270
        %v415 = vunpack.c.l.b16 %v271
        %v416 = vunpack.c.l.b16 %v272
        %v417 = vunpack.c.l.b16 %v273
        %v418 = vunpack.c.l.b16 %v274
        %v419 = vunpack.c.l.b16 %v275
        %v420 = vunpack.c.l.b16 %v276
        %v421 = vunpack.c.l.b16 %v277
        %v422 = vunpack.c.l.b16 %v278
        %v423 = vunpack.c.l.b16 %v279
        %v424 = vunpack.c.l.b16 %v280
        %v425 = vunpack.c.l.b16 %v281
        %v426 = vunpack.c.l.b16 %v282
        %v427 = vunpack.c.l.b16 %v283
        %v428 = vunpack.c.l.b16 %v284
        %v429 = vunpack.c.l.b16 %v285
        %v430 = vunpack.c.l.b16 %v286
        %v431 = vunpack.c.l.b16 %v287
        %v432 = vunpack.c.l.b16 %v288
        %v433 = vunpack.c.l.b16 %v289
        %v434 = vunpack.c.l.b16 %v290
        %v435 = vunpack.c.l.b16 %v291
        %v436 = vunpack.c.l.b16 %v292
        %v437 = vunpack.c.l.b16 %v293
        %v438 = vunpack.c.l.b16 %v294
        %v439 = vunpack.c.l.b16 %v295
        %v440 = vunpack.c.l.b16 %v296
        %v441 = vunpack.c.l.b16 %v297
        %v442 = vunpack.c.l.b16 %v298
        %v443 = vunpack.c.l.b16 %v299
        %v444 = vunpack.c.l.b16 %v300
        %v445 = vpack.c.b16 %v382, %v381
        %v446 = vpack.c.b16 %v384, %v383
        %v447 = vpack.c.b16 %v386, %v385
        %v448 = vpack.c.b16 %v388, %v387
        %v449 = vpack.c.b16 %v390, %v389
        %v450 = vpack.c.b16 %v392, %v391
        %v451 = vpack.c.b16 %v394, %v393
        %v452 = vpack.c.b16 %v396, %v395
        %v453 = vpack.c.b16 %v398, %v397
        %v454 = vpack.c.b16 %v400, %v399
        %v455 = vpack.c.b16 %v402, %v401
        %v456 = vpack.c.b16 %v404, %v403
        %v457 = vpack.c.b16 %v406, %v405
        %v458 = vpack.c.b16 %v408, %v407
        %v459 = vpack.c.b16 %v410, %v409
        %v460 = vpack.c.b16 %v412, %v411
        %v461 = vpack.c.b16 %v414, %v413
        %v462 = vpack.c.b16 %v416, %v415
        %v463 = vpack.c.b16 %v418, %v417
        %v464 = vpack.c.b16 %v420, %v419
        %v465 = vpack.c.b16 %v422, %v421
        %v466 = vpack.c.b16 %v424, %v423
        %v467 = vpack.c.b16 %v426, %v425
        %v468 = vpack.c.b16 %v428, %v427
        %v469 = vpack.c.b16 %v430, %v429
        %v470 = vpack.c.b16 %v432, %v431
        %v471 = vpack.c.b16 %v434, %v433
        %v472 = vpack.c.b16 %v436, %v435
        %v473 = vpack.c.b16 %v438, %v437
        %v474 = vpack.c.b16 %v440, %v439
        %v475 = vpack.c.b16 %v442, %v441
        %v476 = vpack.c.b16 %v444, %v443
        %v525 = vunpack.c.l.b16 %v301
        %v526 = vunpack.c.l.b16 %v302
        %v527 = vunpack.c.l.b16 %v303
        %v528 = vunpack.c.l.b16 %v304
        %v529 = vunpack.c.l.b16 %v305
        %v530 = vunpack.c.l.b16 %v306
        %v531 = vunpack.c.l.b16 %v307
        %v532 = vunpack.c.l.b16 %v308
        %v533 = vunpack.c.l.b16 %v309
        %v534 = vunpack.c.l.b16 %v310
        %v535 = vunpack.c.l.b16 %v311
        %v536 = vunpack.c.l.b16 %v312
        %v537 = vunpack.c.l.b16 %v313
        %v538 = vunpack.c.l.b16 %v314
        %v539 = vunpack.c.l.b16 %v315
        %v540 = vunpack.c.l.b16 %v316
        %v541 = vpack.c.b16 %v526, %v525
        %v542 = vpack.c.b16 %v528, %v527
        %v543 = vpack.c.b16 %v530, %v529
        %v544 = vpack.c.b16 %v532, %v531
        %v545 = vpack.c.b16 %v534, %v533
        %v546 = vpack.c.b16 %v536, %v535
        %v547 = vpack.c.b16 %v538, %v537
        %v548 = vpack.c.b16 %v540, %v539
        %557 = vmatpush.bf16.msra.mxu0 %v548
        %558 = vmatpush.bf16.msra.mxu0 %v547
        %559 = vmatpush.bf16.msra.mxu0 %v546
        %560 = vmatpush.bf16.msra.mxu0 %v545
        %561 = vmatpush.bf16.msra.mxu0 %v544
        %562 = vmatpush.bf16.msra.mxu0 %v543
        %563 = vmatpush.bf16.msra.mxu0 %v542
        %564 = vmatpush.bf16.msra.mxu0 %v541
        %565 = vmatmul.bf16.gmra.mxu0 %v445
        %v566 = vpop.f32.mrf.mxu0
        %v567 = vadd.f32 0.0, %v566
        %v568 = vpop.f32.mrf.mxu0
        %v569 = vadd.f32 0.0, %v568
        %570 = vmatmul.bf16.gmra.mxu0 %v446
        %v571 = vpop.f32.mrf.mxu0
        %v572 = vadd.f32 0.0, %v571
        %v573 = vpop.f32.mrf.mxu0
        %v574 = vadd.f32 0.0, %v573
        %575 = vmatmul.bf16.gmra.mxu0 %v447
        %v576 = vpop.f32.mrf.mxu0
        %v577 = vadd.f32 0.0, %v576
        %v578 = vpop.f32.mrf.mxu0
        %v579 = vadd.f32 0.0, %v578
        %580 = vmatmul.bf16.gmra.mxu0 %v448
        %v581 = vpop.f32.mrf.mxu0
        %v582 = vadd.f32 0.0, %v581
        %v583 = vpop.f32.mrf.mxu0
        %v584 = vadd.f32 0.0, %v583
        %585 = vmatmul.bf16.gmra.mxu0 %v449
        %v586 = vpop.f32.mrf.mxu0
        %v587 = vadd.f32 0.0, %v586
        %v588 = vpop.f32.mrf.mxu0
        %v589 = vadd.f32 0.0, %v588
        %590 = vmatmul.bf16.gmra.mxu0 %v450
        %v591 = vpop.f32.mrf.mxu0
        %v592 = vadd.f32 0.0, %v591
        %v593 = vpop.f32.mrf.mxu0
        %v594 = vadd.f32 0.0, %v593
        %595 = vmatmul.bf16.gmra.mxu0 %v451
        %v596 = vpop.f32.mrf.mxu0
        %v597 = vadd.f32 0.0, %v596
        %v598 = vpop.f32.mrf.mxu0
        %v599 = vadd.f32 0.0, %v598
        %600 = vmatmul.bf16.gmra.mxu0 %v452
        %v601 = vpop.f32.mrf.mxu0
        %v602 = vadd.f32 0.0, %v601
        %v603 = vpop.f32.mrf.mxu0
        %v604 = vadd.f32 0.0, %v603
        %605 = vmatmul.bf16.gmra.mxu0 %v453
        %v606 = vpop.f32.mrf.mxu0
        %v607 = vadd.f32 0.0, %v606
        %v608 = vpop.f32.mrf.mxu0
        %v609 = vadd.f32 0.0, %v608
        %610 = vmatmul.bf16.gmra.mxu0 %v454
        %v611 = vpop.f32.mrf.mxu0
        %v612 = vadd.f32 0.0, %v611
        %v613 = vpop.f32.mrf.mxu0
        %v614 = vadd.f32 0.0, %v613
        %615 = vmatmul.bf16.gmra.mxu0 %v455
        %v616 = vpop.f32.mrf.mxu0
        %v617 = vadd.f32 0.0, %v616
        %v618 = vpop.f32.mrf.mxu0
        %v619 = vadd.f32 0.0, %v618
        %620 = vmatmul.bf16.gmra.mxu0 %v456
        %v621 = vpop.f32.mrf.mxu0
        %v622 = vadd.f32 0.0, %v621
        %v623 = vpop.f32.mrf.mxu0
        %v624 = vadd.f32 0.0, %v623
        %625 = vmatmul.bf16.gmra.mxu0 %v457
        %v626 = vpop.f32.mrf.mxu0
        %v627 = vadd.f32 0.0, %v626
        %v628 = vpop.f32.mrf.mxu0
        %v629 = vadd.f32 0.0, %v628
        %630 = vmatmul.bf16.gmra.mxu0 %v458
        %v631 = vpop.f32.mrf.mxu0
        %v632 = vadd.f32 0.0, %v631
        %v633 = vpop.f32.mrf.mxu0
        %v634 = vadd.f32 0.0, %v633
        %635 = vmatmul.bf16.gmra.mxu0 %v459
        %v636 = vpop.f32.mrf.mxu0
        %v637 = vadd.f32 0.0, %v636
        %v638 = vpop.f32.mrf.mxu0
        %v639 = vadd.f32 0.0, %v638
        %640 = vmatmul.bf16.gmra.mxu0 %v460
        %v641 = vpop.f32.mrf.mxu0
        %v642 = vadd.f32 0.0, %v641
        %v643 = vpop.f32.mrf.mxu0
        %v644 = vadd.f32 0.0, %v643
        %645 = vmatmul.bf16.gmra.mxu0 %v461
        %v646 = vpop.f32.mrf.mxu0
        %v647 = vadd.f32 0.0, %v646
        %v648 = vpop.f32.mrf.mxu0
        %v649 = vadd.f32 0.0, %v648
        %650 = vmatmul.bf16.gmra.mxu0 %v462
        %v651 = vpop.f32.mrf.mxu0
        %v652 = vadd.f32 0.0, %v651
        %v653 = vpop.f32.mrf.mxu0
        %v654 = vadd.f32 0.0, %v653
        %655 = vmatmul.bf16.gmra.mxu0 %v463
        %v656 = vpop.f32.mrf.mxu0
        %v657 = vadd.f32 0.0, %v656
        %v658 = vpop.f32.mrf.mxu0
        %v659 = vadd.f32 0.0, %v658
        %660 = vmatmul.bf16.gmra.mxu0 %v464
        %v661 = vpop.f32.mrf.mxu0
        %v662 = vadd.f32 0.0, %v661
        %v663 = vpop.f32.mrf.mxu0
        %v664 = vadd.f32 0.0, %v663
        %665 = vmatmul.bf16.gmra.mxu0 %v465
        %v666 = vpop.f32.mrf.mxu0
        %v667 = vadd.f32 0.0, %v666
        %v668 = vpop.f32.mrf.mxu0
        %v669 = vadd.f32 0.0, %v668
        %670 = vmatmul.bf16.gmra.mxu0 %v466
        %v671 = vpop.f32.mrf.mxu0
        %v672 = vadd.f32 0.0, %v671
        %v673 = vpop.f32.mrf.mxu0
        %v674 = vadd.f32 0.0, %v673
        %675 = vmatmul.bf16.gmra.mxu0 %v467
        %v676 = vpop.f32.mrf.mxu0
        %v677 = vadd.f32 0.0, %v676
        %v678 = vpop.f32.mrf.mxu0
        %v679 = vadd.f32 0.0, %v678
        %680 = vmatmul.bf16.gmra.mxu0 %v468
        %v681 = vpop.f32.mrf.mxu0
        %v682 = vadd.f32 0.0, %v681
        %v683 = vpop.f32.mrf.mxu0
        %v684 = vadd.f32 0.0, %v683
        %685 = vmatmul.bf16.gmra.mxu0 %v469
        %v686 = vpop.f32.mrf.mxu0
        %v687 = vadd.f32 0.0, %v686
        %v688 = vpop.f32.mrf.mxu0
        %v689 = vadd.f32 0.0, %v688
        %690 = vmatmul.bf16.gmra.mxu0 %v470
        %v691 = vpop.f32.mrf.mxu0
        %v692 = vadd.f32 0.0, %v691
        %v693 = vpop.f32.mrf.mxu0
        %v694 = vadd.f32 0.0, %v693
        %695 = vmatmul.bf16.gmra.mxu0 %v471
        %v696 = vpop.f32.mrf.mxu0
        %v697 = vadd.f32 0.0, %v696
        %v698 = vpop.f32.mrf.mxu0
        %v699 = vadd.f32 0.0, %v698
        %700 = vmatmul.bf16.gmra.mxu0 %v472
        %v701 = vpop.f32.mrf.mxu0
        %v702 = vadd.f32 0.0, %v701
        %v703 = vpop.f32.mrf.mxu0
        %v704 = vadd.f32 0.0, %v703
        %705 = vmatmul.bf16.gmra.mxu0 %v473
        %v706 = vpop.f32.mrf.mxu0
        %v707 = vadd.f32 0.0, %v706
        %v708 = vpop.f32.mrf.mxu0
        %v709 = vadd.f32 0.0, %v708
        %710 = vmatmul.bf16.gmra.mxu0 %v474
        %v711 = vpop.f32.mrf.mxu0
        %v712 = vadd.f32 0.0, %v711
        %v713 = vpop.f32.mrf.mxu0
        %v714 = vadd.f32 0.0, %v713
        %715 = vmatmul.bf16.gmra.mxu0 %v475
        %v716 = vpop.f32.mrf.mxu0
        %v717 = vadd.f32 0.0, %v716
        %v718 = vpop.f32.mrf.mxu0
        %v719 = vadd.f32 0.0, %v718
        %720 = vmatmul.bf16.gmra.mxu0 %v476
        %v721 = vpop.f32.mrf.mxu0
        %v722 = vadd.f32 0.0, %v721
        %v723 = vpop.f32.mrf.mxu0
        %v724 = vadd.f32 0.0, %v723
        %725 = vdwg.mxu0
        %v726 = vld [vmem:[%s2] sm:$0x1]
        %v728 = vperm.slane %v726, 0
        %v730 = vmul.f32 %v567, %v728
        %v731 = vmul.f32 %v569, %v728
        %v732 = vmul.f32 %v572, %v728
        %v733 = vmul.f32 %v574, %v728
        %v734 = vmul.f32 %v577, %v728
        %v735 = vmul.f32 %v579, %v728
        %v736 = vmul.f32 %v582, %v728
        %v737 = vmul.f32 %v584, %v728
        %v738 = vmul.f32 %v587, %v728
        %v739 = vmul.f32 %v589, %v728
        %v740 = vmul.f32 %v592, %v728
        %v741 = vmul.f32 %v594, %v728
        %v742 = vmul.f32 %v597, %v728
        %v743 = vmul.f32 %v599, %v728
        %v744 = vmul.f32 %v602, %v728
        %v745 = vmul.f32 %v604, %v728
        %v746 = vmul.f32 %v607, %v728
        %v747 = vmul.f32 %v609, %v728
        %v748 = vmul.f32 %v612, %v728
        %v749 = vmul.f32 %v614, %v728
        %v750 = vmul.f32 %v617, %v728
        %v751 = vmul.f32 %v619, %v728
        %v752 = vmul.f32 %v622, %v728
        %v753 = vmul.f32 %v624, %v728
        %v754 = vmul.f32 %v627, %v728
        %v755 = vmul.f32 %v629, %v728
        %v756 = vmul.f32 %v632, %v728
        %v757 = vmul.f32 %v634, %v728
        %v758 = vmul.f32 %v637, %v728
        %v759 = vmul.f32 %v639, %v728
        %v760 = vmul.f32 %v642, %v728
        %v761 = vmul.f32 %v644, %v728
        %v762 = vmul.f32 %v647, %v728
        %v763 = vmul.f32 %v649, %v728
        %v764 = vmul.f32 %v652, %v728
        %v765 = vmul.f32 %v654, %v728
        %v766 = vmul.f32 %v657, %v728
        %v767 = vmul.f32 %v659, %v728
        %v768 = vmul.f32 %v662, %v728
        %v769 = vmul.f32 %v664, %v728
        %v770 = vmul.f32 %v667, %v728
        %v771 = vmul.f32 %v669, %v728
        %v772 = vmul.f32 %v672, %v728
        %v773 = vmul.f32 %v674, %v728
        %v774 = vmul.f32 %v677, %v728
        %v775 = vmul.f32 %v679, %v728
        %v776 = vmul.f32 %v682, %v728
        %v777 = vmul.f32 %v684, %v728
        %v778 = vmul.f32 %v687, %v728
        %v779 = vmul.f32 %v689, %v728
        %v780 = vmul.f32 %v692, %v728
        %v781 = vmul.f32 %v694, %v728
        %v782 = vmul.f32 %v697, %v728
        %v783 = vmul.f32 %v699, %v728
        %v784 = vmul.f32 %v702, %v728
        %v785 = vmul.f32 %v704, %v728
        %v786 = vmul.f32 %v707, %v728
        %v787 = vmul.f32 %v709, %v728
        %v788 = vmul.f32 %v712, %v728
        %v789 = vmul.f32 %v714, %v728
        %v790 = vmul.f32 %v717, %v728
        %v791 = vmul.f32 %v719, %v728
        %v792 = vmul.f32 %v722, %v728
        %v793 = vmul.f32 %v724, %v728
        %v794 = vld [vmem:[%s3] sm:$0x1]
        %v796 = vperm.slane %v794, 0
        %v798 = vadd.f32 %v730, %v796
        %v799 = vadd.f32 %v731, %v796
        %v800 = vadd.f32 %v732, %v796
        %v801 = vadd.f32 %v733, %v796
        %v802 = vadd.f32 %v734, %v796
        %v803 = vadd.f32 %v735, %v796
        %v804 = vadd.f32 %v736, %v796
        %v805 = vadd.f32 %v737, %v796
        %v806 = vadd.f32 %v738, %v796
        %v807 = vadd.f32 %v739, %v796
        %v808 = vadd.f32 %v740, %v796
        %v809 = vadd.f32 %v741, %v796
        %v810 = vadd.f32 %v742, %v796
        %v811 = vadd.f32 %v743, %v796
        %v812 = vadd.f32 %v744, %v796
        %v813 = vadd.f32 %v745, %v796
        %v814 = vadd.f32 %v746, %v796
        %v815 = vadd.f32 %v747, %v796
        %v816 = vadd.f32 %v748, %v796
        %v817 = vadd.f32 %v749, %v796
        %v818 = vadd.f32 %v750, %v796
        %v819 = vadd.f32 %v751, %v796
        %v820 = vadd.f32 %v752, %v796
        %v821 = vadd.f32 %v753, %v796
        %v822 = vadd.f32 %v754, %v796
        %v823 = vadd.f32 %v755, %v796
        %v824 = vadd.f32 %v756, %v796
        %v825 = vadd.f32 %v757, %v796
        %v826 = vadd.f32 %v758, %v796
        %v827 = vadd.f32 %v759, %v796
        %v828 = vadd.f32 %v760, %v796
        %v829 = vadd.f32 %v761, %v796
        %v830 = vadd.f32 %v762, %v796
        %v831 = vadd.f32 %v763, %v796
        %v832 = vadd.f32 %v764, %v796
        %v833 = vadd.f32 %v765, %v796
        %v834 = vadd.f32 %v766, %v796
        %v835 = vadd.f32 %v767, %v796
        %v836 = vadd.f32 %v768, %v796
        %v837 = vadd.f32 %v769, %v796
        %v838 = vadd.f32 %v770, %v796
        %v839 = vadd.f32 %v771, %v796
        %v840 = vadd.f32 %v772, %v796
        %v841 = vadd.f32 %v773, %v796
        %v842 = vadd.f32 %v774, %v796
        %v843 = vadd.f32 %v775, %v796
        %v844 = vadd.f32 %v776, %v796
        %v845 = vadd.f32 %v777, %v796
        %v846 = vadd.f32 %v778, %v796
        %v847 = vadd.f32 %v779, %v796
        %v848 = vadd.f32 %v780, %v796
        %v849 = vadd.f32 %v781, %v796
        %v850 = vadd.f32 %v782, %v796
        %v851 = vadd.f32 %v783, %v796
        %v852 = vadd.f32 %v784, %v796
        %v853 = vadd.f32 %v785, %v796
        %v854 = vadd.f32 %v786, %v796
        %v855 = vadd.f32 %v787, %v796
        %v856 = vadd.f32 %v788, %v796
        %v857 = vadd.f32 %v789, %v796
        %v858 = vadd.f32 %v790, %v796
        %v859 = vadd.f32 %v791, %v796
        %v860 = vadd.f32 %v792, %v796
        %v861 = vadd.f32 %v793, %v796
        %v862 = vmax.f32 %v798, 0.0
        %v863 = vmax.f32 %v799, 0.0
        %v864 = vmax.f32 %v800, 0.0
        %v865 = vmax.f32 %v801, 0.0
        %v866 = vmax.f32 %v802, 0.0
        %v867 = vmax.f32 %v803, 0.0
        %v868 = vmax.f32 %v804, 0.0
        %v869 = vmax.f32 %v805, 0.0
        %v870 = vmax.f32 %v806, 0.0
        %v871 = vmax.f32 %v807, 0.0
        %v872 = vmax.f32 %v808, 0.0
        %v873 = vmax.f32 %v809, 0.0
        %v874 = vmax.f32 %v810, 0.0
        %v875 = vmax.f32 %v811, 0.0
        %v876 = vmax.f32 %v812, 0.0
        %v877 = vmax.f32 %v813, 0.0
        %v878 = vmax.f32 %v814, 0.0
        %v879 = vmax.f32 %v815, 0.0
        %v880 = vmax.f32 %v816, 0.0
        %v881 = vmax.f32 %v817, 0.0
        %v882 = vmax.f32 %v818, 0.0
        %v883 = vmax.f32 %v819, 0.0
        %v884 = vmax.f32 %v820, 0.0
        %v885 = vmax.f32 %v821, 0.0
        %v886 = vmax.f32 %v822, 0.0
        %v887 = vmax.f32 %v823, 0.0
        %v888 = vmax.f32 %v824, 0.0
        %v889 = vmax.f32 %v825, 0.0
        %v890 = vmax.f32 %v826, 0.0
        %v891 = vmax.f32 %v827, 0.0
        %v892 = vmax.f32 %v828, 0.0
        %v893 = vmax.f32 %v829, 0.0
        %v894 = vmax.f32 %v830, 0.0
        %v895 = vmax.f32 %v831, 0.0
        %v896 = vmax.f32 %v832, 0.0
        %v897 = vmax.f32 %v833, 0.0
        %v898 = vmax.f32 %v834, 0.0
        %v899 = vmax.f32 %v835, 0.0
        %v900 = vmax.f32 %v836, 0.0
        %v901 = vmax.f32 %v837, 0.0
        %v902 = vmax.f32 %v838, 0.0
        %v903 = vmax.f32 %v839, 0.0
        %v904 = vmax.f32 %v840, 0.0
        %v905 = vmax.f32 %v841, 0.0
        %v906 = vmax.f32 %v842, 0.0
        %v907 = vmax.f32 %v843, 0.0
        %v908 = vmax.f32 %v844, 0.0
        %v909 = vmax.f32 %v845, 0.0
        %v910 = vmax.f32 %v846, 0.0
        %v911 = vmax.f32 %v847, 0.0
        %v912 = vmax.f32 %v848, 0.0
        %v913 = vmax.f32 %v849, 0.0
        %v914 = vmax.f32 %v850, 0.0
        %v915 = vmax.f32 %v851, 0.0
        %v916 = vmax.f32 %v852, 0.0
        %v917 = vmax.f32 %v853, 0.0
        %v918 = vmax.f32 %v854, 0.0
        %v919 = vmax.f32 %v855, 0.0
        %v920 = vmax.f32 %v856, 0.0
        %v921 = vmax.f32 %v857, 0.0
        %v922 = vmax.f32 %v858, 0.0
        %v923 = vmax.f32 %v859, 0.0
        %v924 = vmax.f32 %v860, 0.0
        %v925 = vmax.f32 %v861, 0.0
        %v926 = vpack.c.bf16 %v862, %v862
        %v927 = vpack.c.bf16 %v863, %v863
        %v928 = vpack.c.bf16 %v864, %v864
        %v929 = vpack.c.bf16 %v865, %v865
        %v930 = vpack.c.bf16 %v866, %v866
        %v931 = vpack.c.bf16 %v867, %v867
        %v932 = vpack.c.bf16 %v868, %v868
        %v933 = vpack.c.bf16 %v869, %v869
        %v934 = vpack.c.bf16 %v870, %v870
        %v935 = vpack.c.bf16 %v871, %v871
        %v936 = vpack.c.bf16 %v872, %v872
        %v937 = vpack.c.bf16 %v873, %v873
        %v938 = vpack.c.bf16 %v874, %v874
        %v939 = vpack.c.bf16 %v875, %v875
        %v940 = vpack.c.bf16 %v876, %v876
        %v941 = vpack.c.bf16 %v877, %v877
        %v942 = vpack.c.bf16 %v878, %v878
        %v943 = vpack.c.bf16 %v879, %v879
        %v944 = vpack.c.bf16 %v880, %v880
        %v945 = vpack.c.bf16 %v881, %v881
        %v946 = vpack.c.bf16 %v882, %v882
        %v947 = vpack.c.bf16 %v883, %v883
        %v948 = vpack.c.bf16 %v884, %v884
        %v949 = vpack.c.bf16 %v885, %v885
        %v950 = vpack.c.bf16 %v886, %v886
        %v951 = vpack.c.bf16 %v887, %v887
        %v952 = vpack.c.bf16 %v888, %v888
        %v953 = vpack.c.bf16 %v889, %v889
        %v954 = vpack.c.bf16 %v890, %v890
        %v955 = vpack.c.bf16 %v891, %v891
        %v956 = vpack.c.bf16 %v892, %v892
        %v957 = vpack.c.bf16 %v893, %v893
        %v958 = vpack.c.bf16 %v894, %v894
        %v959 = vpack.c.bf16 %v895, %v895
        %v960 = vpack.c.bf16 %v896, %v896
        %v961 = vpack.c.bf16 %v897, %v897
        %v962 = vpack.c.bf16 %v898, %v898
        %v963 = vpack.c.bf16 %v899, %v899
        %v964 = vpack.c.bf16 %v900, %v900
        %v965 = vpack.c.bf16 %v901, %v901
        %v966 = vpack.c.bf16 %v902, %v902
        %v967 = vpack.c.bf16 %v903, %v903
        %v968 = vpack.c.bf16 %v904, %v904
        %v969 = vpack.c.bf16 %v905, %v905
        %v970 = vpack.c.bf16 %v906, %v906
        %v971 = vpack.c.bf16 %v907, %v907
        %v972 = vpack.c.bf16 %v908, %v908
        %v973 = vpack.c.bf16 %v909, %v909
        %v974 = vpack.c.bf16 %v910, %v910
        %v975 = vpack.c.bf16 %v911, %v911
        %v976 = vpack.c.bf16 %v912, %v912
        %v977 = vpack.c.bf16 %v913, %v913
        %v978 = vpack.c.bf16 %v914, %v914
        %v979 = vpack.c.bf16 %v915, %v915
        %v980 = vpack.c.bf16 %v916, %v916
        %v981 = vpack.c.bf16 %v917, %v917
        %v982 = vpack.c.bf16 %v918, %v918
        %v983 = vpack.c.bf16 %v919, %v919
        %v984 = vpack.c.bf16 %v920, %v920
        %v985 = vpack.c.bf16 %v921, %v921
        %v986 = vpack.c.bf16 %v922, %v922
        %v987 = vpack.c.bf16 %v923, %v923
        %v988 = vpack.c.bf16 %v924, %v924
        %v989 = vpack.c.bf16 %v925, %v925
        %990 = vst [vmem:[%s234] sm:$0xf] %v926
        %991 = vst [vmem:[%s234 + $0x4] sm:$0xf] %v927
        %992 = vst [vmem:[%s234 + $0x8] sm:$0xf] %v928
        %993 = vst [vmem:[%s234 + $0xc] sm:$0xf] %v929
        %994 = vst [vmem:[%s234 + $0x10] sm:$0xf] %v930
        %995 = vst [vmem:[%s234 + $0x14] sm:$0xf] %v931
        %996 = vst [vmem:[%s234 + $0x18] sm:$0xf] %v932
        %997 = vst [vmem:[%s234 + $0x1c] sm:$0xf] %v933
        %998 = vst [vmem:[%s234 + $0x20] sm:$0xf] %v934
        %999 = vst [vmem:[%s234 + $0x24] sm:$0xf] %v935
        %1000 = vst [vmem:[%s234 + $0x28] sm:$0xf] %v936
        %1001 = vst [vmem:[%s234 + $0x2c] sm:$0xf] %v937
        %1002 = vst [vmem:[%s234 + $0x30] sm:$0xf] %v938
        %1003 = vst [vmem:[%s234 + $0x34] sm:$0xf] %v939
        %1004 = vst [vmem:[%s234 + $0x38] sm:$0xf] %v940
        %1005 = vst [vmem:[%s234 + $0x3c] sm:$0xf] %v941
        %1006 = vst [vmem:[%s234 + $0x40] sm:$0xf] %v942
        %1007 = vst [vmem:[%s234 + $0x44] sm:$0xf] %v943
        %1008 = vst [vmem:[%s234 + $0x48] sm:$0xf] %v944
        %1009 = vst [vmem:[%s234 + $0x4c] sm:$0xf] %v945
        %1010 = vst [vmem:[%s234 + $0x50] sm:$0xf] %v946
        %1011 = vst [vmem:[%s234 + $0x54] sm:$0xf] %v947
        %1012 = vst [vmem:[%s234 + $0x58] sm:$0xf] %v948
        %1013 = vst [vmem:[%s234 + $0x5c] sm:$0xf] %v949
        %1014 = vst [vmem:[%s234 + $0x60] sm:$0xf] %v950
        %1015 = vst [vmem:[%s234 + $0x64] sm:$0xf] %v951
        %1016 = vst [vmem:[%s234 + $0x68] sm:$0xf] %v952
        %1017 = vst [vmem:[%s234 + $0x6c] sm:$0xf] %v953
        %1018 = vst [vmem:[%s234 + $0x70] sm:$0xf] %v954
        %1019 = vst [vmem:[%s234 + $0x74] sm:$0xf] %v955
        %1020 = vst [vmem:[%s234 + $0x78] sm:$0xf] %v956
        %1021 = vst [vmem:[%s234 + $0x7c] sm:$0xf] %v957
        %1022 = vst [vmem:[%s234 + $0x80] sm:$0xf] %v958
        %1023 = vst [vmem:[%s234 + $0x84] sm:$0xf] %v959
        %1024 = vst [vmem:[%s234 + $0x88] sm:$0xf] %v960
        %1025 = vst [vmem:[%s234 + $0x8c] sm:$0xf] %v961
        %1026 = vst [vmem:[%s234 + $0x90] sm:$0xf] %v962
        %1027 = vst [vmem:[%s234 + $0x94] sm:$0xf] %v963
        %1028 = vst [vmem:[%s234 + $0x98] sm:$0xf] %v964
        %1029 = vst [vmem:[%s234 + $0x9c] sm:$0xf] %v965
        %1030 = vst [vmem:[%s234 + $0xa0] sm:$0xf] %v966
        %1031 = vst [vmem:[%s234 + $0xa4] sm:$0xf] %v967
        %1032 = vst [vmem:[%s234 + $0xa8] sm:$0xf] %v968
        %1033 = vst [vmem:[%s234 + $0xac] sm:$0xf] %v969
        %1034 = vst [vmem:[%s234 + $0xb0] sm:$0xf] %v970
        %1035 = vst [vmem:[%s234 + $0xb4] sm:$0xf] %v971
        %1036 = vst [vmem:[%s234 + $0xb8] sm:$0xf] %v972
        %1037 = vst [vmem:[%s234 + $0xbc] sm:$0xf] %v973
        %1038 = vst [vmem:[%s234 + $0xc0] sm:$0xf] %v974
        %1039 = vst [vmem:[%s234 + $0xc4] sm:$0xf] %v975
        %1040 = vst [vmem:[%s234 + $0xc8] sm:$0xf] %v976
        %1041 = vst [vmem:[%s234 + $0xcc] sm:$0xf] %v977
        %1042 = vst [vmem:[%s234 + $0xd0] sm:$0xf] %v978
        %1043 = vst [vmem:[%s234 + $0xd4] sm:$0xf] %v979
        %1044 = vst [vmem:[%s234 + $0xd8] sm:$0xf] %v980
        %1045 = vst [vmem:[%s234 + $0xdc] sm:$0xf] %v981
        %1046 = vst [vmem:[%s234 + $0xe0] sm:$0xf] %v982
        %1047 = vst [vmem:[%s234 + $0xe4] sm:$0xf] %v983
        %1048 = vst [vmem:[%s234 + $0xe8] sm:$0xf] %v984
        %1049 = vst [vmem:[%s234 + $0xec] sm:$0xf] %v985
        %1050 = vst [vmem:[%s234 + $0xf0] sm:$0xf] %v986
        %1051 = vst [vmem:[%s234 + $0xf4] sm:$0xf] %v987
        %1052 = vst [vmem:[%s234 + $0xf8] sm:$0xf] %v988
        %1053 = vst [vmem:[%s234 + $0xfc] sm:$0xf] %v989
        %s1054 = sand.u32 %s119, 1
        %s1055 = scalar_lea.sflag [#allocation4], %s1054
        %s1056 = sand.u32 %s119, 1
        %s1057 = smul.addr %s1056, 256
        %s1058 = scalar_lea.vmem [#allocation7], %s1057
        // Predicated region
        $region45: #{tpu_custom_call.1} parent=35 // pred_check
          %p1059 = pneg %p129
        $region46: #{tpu_custom_call.1} parent=35 // pred_check_branch
          %1061 = sbr.rel (%p1059) target = $region48
        $region47: #{tpu_custom_call.1} parent=35 // pred_region
          %s1062 = smul.u32 64, %s22
          %1064 = vsyncadd %s1055, 0
          %s1065 = smul.addr %s1062, 4
          %s1066 = scalar_lea.hbm %s4, %s1065
          %s1067 = sshll.u32 %s1058, 4
          %s1068 = int_to_ptr.vmem [resolvable:$true] %s1067
          %s1069 = sshll.u32 %s1066, 4
          %s1070 = int_to_ptr.hbm [resolvable:$true] %s1069
          %1075 = dma.vmem_to_hbm [thread:$0]  %s1068, 4096, %s1070, %s1055, 64, 64, 4
        $region48: #{tpu_custom_call.1} parent=35 // pred_fallthru
          _
      $region36: #{tpu_custom_call.1} parent=5 // pred_fallthru
        _
      %p1076 = scmp.le.s32.totalorder 2, %s17
      // Predicated region
      $region49: #{tpu_custom_call.1} parent=5 // pred_check
        %p1077 = pneg %p1076
      $region50: #{tpu_custom_call.1} parent=5 // pred_check_branch
        %1079 = sbr.rel (%p1077) target = $region52
      $region51: #{tpu_custom_call.1} parent=5 // pred_region
        %s1080 = ssub.s32 %s17, 2
        // Predicated region
        $region53: #{tpu_custom_call.1} parent=51 // pred_check
          %p1081 = pneg %p135
        $region54: #{tpu_custom_call.1} parent=51 // pred_check_branch
          %1083 = sbr.rel (%p1081) target = $region56
        $region55: #{tpu_custom_call.1} parent=51 // pred_region
          %s1084 = sand.u32 %s120, 1
          %s1085 = scalar_lea.sflag [#allocation4], %s1084
          %s1086 = sand.u32 %s120, 1
          %s1087 = smul.addr %s1086, 256
          %s1088 = scalar_lea.vmem [#allocation7], %s1087
          %1090 = dma.done %s1085, 4096
        $region56: #{tpu_custom_call.1} parent=51 // pred_fallthru
          _
      $region52: #{tpu_custom_call.1} parent=5 // pred_fallthru
        _
    $region6: #{tpu_custom_call.1} parent=1 // loop_footer
      %s21 = sadd.s32 1, %s17
    $region7: #{tpu_custom_call.1} parent=1 // loop_footer_branch
      %16 = sbr.rel target = $region3
    $region8: #{tpu_custom_call.1} parent=1 // loop_exit
      _
    %1091 = vsyncpa [#allocation3], 1
    %s1092 = scalar_lea.sflag [#allocation3], 1
    %1093 = vsyncpa %s1092, 1
    %1094 = vsyncpa [#allocation6], 1
    %1095 = vsyncpa [#allocation4], 1
    %s1096 = scalar_lea.sflag [#allocation4], 1
    %1097 = vsyncpa %s1096, 1

</llo_original>
